<compile_context>
chip_gen: v5e
topology: v5e:2x2
jax: 0.10.0
libtpu: 0.0.40
codegen_flags: <defaults>
</compile_context>

<pallas_src>
import jax
import jax.numpy as jnp
from jax.experimental import pallas as pl
from jax.experimental.pallas import tpu as pltpu


def _sap_kernel(x_ref, w_ref, b_ref, o_ref):
    """One batch slab per grid step.

    x_ref : (Bn, T, H)  VMEM   activation slab (input dtype)
    w_ref : (1, H)      VMEM   projection weight (shared, same block every step)
    b_ref : (1,)        SMEM   scalar bias (f32)
    o_ref : (Bn, H)     VMEM   pooled output
    """
    b = b_ref[0]                                   # scalar, SMEM path
    w = w_ref[...]                                 # (1, H), input dtype

    # ---- phase 1: scores = x @ w^T + b, kept in reduction-native (Bn, T, 1) layout ----
    x = x_ref[...]                                 # (Bn, T, H), input dtype (no upcast)
    scores = jnp.sum(x * w, axis=-1, keepdims=True, dtype=jnp.float32) + b   # (Bn, T, 1)

    # ---- softmax over T (axis=1, sublane axis) -- unnormalized weights ----
    m = jnp.max(scores, axis=1, keepdims=True)     # (Bn, 1, 1)
    e = jnp.exp(scores - m)                        # (Bn, T, 1)  f32
    denom = jnp.sum(e, axis=1, keepdims=True)      # (Bn, 1, 1)  f32

    # ---- phase 2: unnormalized weighted sum, normalize once on the small accumulator ----
    # re-read x_ref so the big slab is not held live in vregs across the softmax
    x2 = x_ref[...]                                # (Bn, T, H), input dtype
    acc = jnp.sum(x2 * e.astype(x2.dtype), axis=1, dtype=jnp.float32)        # (Bn, H)
    out = acc / denom[:, 0, :]                     # exact f32 divide, (Bn, H) / (Bn, 1)
    o_ref[...] = out.astype(o_ref.dtype)


def _round_up(v, m):
    return ((v + m - 1) // m) * m


def _pick_bn(n, target_bn):
    """Pick the batch block size.

    Prefers a multiple-of-8 divisor of n (no host-side padding of the activation
    tensor); falls back to bn == n for small batches, and only as a last resort pads
    n up by <= 7 rows.
    Returns (bn, n_total) with n_total >= n.
    """
    if n <= 8 or n <= target_bn:
        return n, n
    start = max(8, min(target_bn, n))
    start -= start % 8
    for cand in range(start, 7, -8):
        if n % cand == 0:
            return cand, n
    # no multiple-of-8 divisor of n: pad by at most 7 rows
    n_total = _round_up(n, 8)
    for cand in range(start, 7, -8):
        if n_total % cand == 0:
            return cand, n_total
    return 8, n_total


def self_attention_pooling(batch_rep, w, b, *, target_block_bytes=4 << 20):
    """batch_rep: (N, T, H), w: (1, H), b: 1-element array  ->  (N, H)."""
    N, T, H = batch_rep.shape
    dtype = batch_rep.dtype
    itemsize = jnp.dtype(dtype).itemsize

    # VMEM footprint per batch row (lane/sublane padded inside VMEM)
    row_bytes_vmem = _round_up(T, 8) * _round_up(H, 128) * itemsize
    target_bn = max(1, target_block_bytes // max(row_bytes_vmem, 1))

    bn, n_total = _pick_bn(N, int(target_bn))

    # v7x has 2 TensorCores sharing HBM bandwidth: make sure the "parallel" batch axis
    # has at least 2 grid steps when the whole batch would otherwise fit in one block.
    if n_total == bn and N >= 16 and N % 16 == 0:
        bn = N // 2

    # Only the last-resort path pads the activation tensor (by <= 7 rows).
    if n_total > N:
        x_in = jnp.pad(batch_rep, ((0, n_total - N), (0, 0), (0, 0)))
    else:
        x_in = batch_rep

    b_flat = jnp.reshape(b, (1,)).astype(jnp.float32)
    w_in = w.astype(dtype)

    # Scoped-VMEM guard: the double-buffered input slab dominates.  Raise the limit
    # only when needed, never past v7x's 64 MiB physical VMEM.
    block_bytes = bn * row_bytes_vmem
    vmem_limit = None
    if 2 * block_bytes > (20 << 20):
        vmem_limit = int(min(2 * block_bytes + (8 << 20), 64 << 20))
    # TODO(synk): for extreme T*H where even a bn=8 slab exceeds ~64 MiB, add a second
    # ("arbitrary") grid axis over T with online-softmax (m/l/acc) VMEM accumulators.

    cost = pl.CostEstimate(
        flops=4 * n_total * T * H,                  # scores + weighted sum
        transcendentals=n_total * T,                # exp
        bytes_accessed=(n_total * T * H + n_total * H + H) * itemsize,
    )

    out = pl.pallas_call(
        _sap_kernel,
        out_shape=jax.ShapeDtypeStruct((n_total, H), dtype),
        grid_spec=pltpu.PrefetchScalarGridSpec(
            num_scalar_prefetch=0,
            grid=(n_total // bn,),
            in_specs=[
                pl.BlockSpec((bn, T, H), lambda i: (i, 0, 0)),        # activation slab
                pl.BlockSpec((1, H), lambda i: (0, 0)),               # shared weight
                pl.BlockSpec(memory_space=pltpu.MemorySpace.SMEM),    # scalar bias
            ],
            out_specs=pl.BlockSpec((bn, H), lambda i: (i, 0)),
        ),
        compiler_params=pltpu.CompilerParams(
            dimension_semantics=("parallel",),      # batch axis -> megacore on v7x
            vmem_limit_bytes=vmem_limit,
        ),
        cost_estimate=cost,
    )(x_in, w_in, b_flat)

    return out[:N] if n_total > N else out


def self_attention_pooling_ref(batch_rep, w, b):
    """Pure-JAX reference mirroring the PyTorch forward."""
    scores = jnp.einsum("nth,oh->nto", batch_rep, w)[..., 0] + jnp.reshape(b, ())
    att_w = jax.nn.softmax(scores, axis=1)[..., None]             # (N, T, 1)
    return jnp.sum(batch_rep * att_w, axis=1)                     # (N, H)


if __name__ == "__main__":
    N, T, H = 2, 8, 32  # batch, seq len, hidden dim

    key = jax.random.PRNGKey(0)
    kx, kw, kb = jax.random.split(key, 3)

    batch_rep = jax.random.normal(kx, (N, T, H), dtype=jnp.float32)

    # nn.Linear(input_dim, 1): weight (1, H), bias (1,) with PyTorch-like init range
    bound = 1.0 / (H ** 0.5)
    w = jax.random.uniform(kw, (1, H), jnp.float32, -bound, bound)
    b = jax.random.uniform(kb, (1,), jnp.float32, -bound, bound)

    out = jax.block_until_ready(self_attention_pooling(batch_rep, w, b))
    ref = self_attention_pooling_ref(batch_rep, w, b)

    assert out.shape == (N, H)
    assert jnp.allclose(out, ref, atol=1e-4, rtol=1e-4), "mismatch vs reference"

    print("KERNEL_OK")
</pallas_src>

<mosaic_0001>
module attributes {stable_mosaic.version = 11 : i64} {
  func.func @_sap_kernel(%arg0: i32, %arg1: memref<2x8x32xf32, #tpu.memory_space<vmem>>, %arg2: memref<1x32xf32, #tpu.memory_space<vmem>>, %arg3: memref<1xf32, #tpu.memory_space<smem>>, %arg4: memref<2x32xf32, #tpu.memory_space<vmem>>) attributes {dimension_semantics = [#tpu.dimension_semantics<parallel>], iteration_bounds = array<i64: 1>, scalar_prefetch = 0 : i64, scratch_operands = 0 : i64, tpu.core_type = #tpu.core_type<tc>, window_params = [{transform_indices = @transform_0, window_bounds = array<i64: 2, 8, 32>}, {pipeline_mode = #tpu.pipeline_mode<synchronous>, transform_indices = @transform_1, window_bounds = array<i64: 1, 32>}, {transform_indices = @transform_2, window_bounds = array<i64: 1>}, {transform_indices = @transform_3, window_bounds = array<i64: 2, 32>}]} {
    %c0 = arith.constant 0 : index
    %0 = memref.load %arg3[%c0] : memref<1xf32, #tpu.memory_space<smem>>
    %c0_0 = arith.constant 0 : index
    %c0_1 = arith.constant 0 : index
    %1 = vector.load %arg2[%c0_0, %c0_1] : memref<1x32xf32, #tpu.memory_space<vmem>>, vector<1x32xf32>
    %c0_2 = arith.constant 0 : index
    %c0_3 = arith.constant 0 : index
    %c0_4 = arith.constant 0 : index
    %2 = vector.load %arg1[%c0_2, %c0_3, %c0_4] : memref<2x8x32xf32, #tpu.memory_space<vmem>>, vector<2x8x32xf32>
    %3 = vector.shape_cast %1 : vector<1x32xf32> to vector<1x1x32xf32>
    %4 = vector.broadcast %3 : vector<1x1x32xf32> to vector<2x8x32xf32>
    %5 = arith.mulf %2, %4 : vector<2x8x32xf32>
    %cst = arith.constant dense<0.000000e+00> : vector<2x8xf32>
    %6 = vector.multi_reduction <add>, %5, %cst [2] : vector<2x8x32xf32> to vector<2x8xf32>
    %7 = vector.shape_cast %6 : vector<2x8xf32> to vector<2x8x1xf32>
    %8 = vector.broadcast %0 : f32 to vector<2x8x1xf32>
    %9 = arith.addf %7, %8 : vector<2x8x1xf32>
    %cst_5 = arith.constant dense<0xFF800000> : vector<2x1xf32>
    %10 = vector.multi_reduction <maximumf>, %9, %cst_5 [1] : vector<2x8x1xf32> to vector<2x1xf32>
    %11 = vector.shape_cast %10 : vector<2x1xf32> to vector<2x1x1xf32>
    %12 = vector.broadcast %11 : vector<2x1x1xf32> to vector<2x8x1xf32>
    %13 = arith.subf %9, %12 : vector<2x8x1xf32>
    %14 = math.exp %13 : vector<2x8x1xf32>
    %cst_6 = arith.constant dense<0.000000e+00> : vector<2x1xf32>
    %15 = vector.multi_reduction <add>, %14, %cst_6 [1] : vector<2x8x1xf32> to vector<2x1xf32>
    %16 = vector.shape_cast %15 : vector<2x1xf32> to vector<2x1x1xf32>
    %c0_7 = arith.constant 0 : index
    %c0_8 = arith.constant 0 : index
    %c0_9 = arith.constant 0 : index
    %17 = vector.load %arg1[%c0_7, %c0_8, %c0_9] : memref<2x8x32xf32, #tpu.memory_space<vmem>>, vector<2x8x32xf32>
    %18 = vector.broadcast %14 : vector<2x8x1xf32> to vector<2x8x32xf32>
    %19 = arith.mulf %17, %18 : vector<2x8x32xf32>
    %cst_10 = arith.constant dense<0.000000e+00> : vector<2x32xf32>
    %20 = vector.multi_reduction <add>, %19, %cst_10 [1] : vector<2x8x32xf32> to vector<2x32xf32>
    %21 = vector.shape_cast %16 : vector<2x1x1xf32> to vector<2x1xf32>
    %22 = vector.broadcast %21 : vector<2x1xf32> to vector<2x32xf32>
    %23 = arith.divf %20, %22 : vector<2x32xf32>
    %c0_11 = arith.constant 0 : index
    %c0_12 = arith.constant 0 : index
    %24 = vector.load %arg4[%c0_11, %c0_12] : memref<2x32xf32, #tpu.memory_space<vmem>>, vector<2x32xf32>
    tpu.vector_store %arg4[%c0_11, %c0_12], %23 {strides = array<i32>} : memref<2x32xf32, #tpu.memory_space<vmem>>, vector<2x32xf32>,
    return
  }
  func.func @transform_0(%arg0: i32) -> (i32, i32, i32) {
    %c0_i32 = arith.constant 0 : i32
    %c0_i32_0 = arith.constant 0 : i32
    %c0_i32_1 = arith.constant 0 : i32
    return %arg0, %c0_i32, %c0_i32_0 : i32, i32, i32
  }
  func.func @transform_1(%arg0: i32) -> (i32, i32) {
    %c0_i32 = arith.constant 0 : i32
    %c0_i32_0 = arith.constant 0 : i32
    %c0_i32_1 = arith.constant 0 : i32
    return %c0_i32, %c0_i32_0 : i32, i32
  }
  func.func @transform_2(%arg0: i32) -> i32 {
    %c0_i32 = arith.constant 0 : i32
    %c0_i32_0 = arith.constant 0 : i32
    return %c0_i32 : i32
  }
  func.func @transform_3(%arg0: i32) -> (i32, i32) {
    %c0_i32 = arith.constant 0 : i32
    %c0_i32_0 = arith.constant 0 : i32
    return %arg0, %c0_i32 : i32, i32
  }
}

</mosaic_0001>

<llo_original>
// kernel: tpu_custom_call.1
$region0: #{tpu_custom_call.1}
  #allocation0 [shape = 'u32[]', space=smem, size = 0x4, offset = 0x4, fixed_abs, tag = 'smem constant byte address 0x4 - core index']
  #allocation1 [shape = 'u32[72,128]{1,0:T(1,128)}', space=vmem, size = 0x9000, scoped, tag = 'internal scratch']
  #allocation2 [shape = 'f32[1]{0:T(128)S(6)}', space=smem, size = 0x200, scoped, tag = 'scoped memory for tpu_custom_call.1']
  %s0 = inlined_call_operand.hbm [shape: f32[2,8,32], index: 0, kind: input, shape index: {}]
  %s1 = inlined_call_operand.vmem [shape: f32[1,32], index: 1, kind: input, shape index: {}]
  %s2 = inlined_call_operand.<no memory space> [shape: f32[1], index: 2, kind: input, shape index: {}]
  %s3 = inlined_call_operand.hbm [shape: f32[2,32], index: 3, kind: output, shape index: {}]
  %s4 = sld [smem:[#allocation0]]
  $region26: #{tpu_custom_call.1} parent=0
    _
  %s6 = ssub.s32 1, %s4
  %s7 = scalar_select 0, %s6, %s4
  %8 = sst [smem:[#allocation2]] %s2
  $region1: #{tpu_custom_call.1} parent=0
    #allocation3 [shape = 'u8[8192]{0}', space=vmem, size = 0x2000, scoped, tag = 'input window, operand 0, single buffered']
    #allocation4 [shape = 's32[1]{0}', space=sflag, size = 0x4, scoped, tag = 'scoped memory for tpu_custom_call.1']
    #allocation5 [shape = 's32[1]{0}', space=sflag, size = 0x4, scoped, tag = 'scoped memory for tpu_custom_call.1']
    #allocation6 [shape = 'u8[1024]{0}', space=vmem, size = 0x400, scoped, tag = 'output window, operand 0, single buffered']
    %9 = vsyncpa [#allocation4], 0
    %10 = vsyncpa [#allocation5], 0
    // Predicated region
    $region2: #{tpu_custom_call.1} parent=1 // pred_check
      _
    $region3: #{tpu_custom_call.1} parent=1 // pred_check_branch
      %12 = sbr.rel (0) target = $region5
    $region4: #{tpu_custom_call.1} parent=1 // pred_region
      %14 = vsyncadd [#allocation4], 0
      %s15 = sshll.u32 %s0, 4
      %s16 = int_to_ptr.hbm [resolvable:$true] %s15
      %s17 = sshll.u32 [#allocation3], 4
      %s18 = int_to_ptr.vmem [resolvable:$true] %s17
      %23 = dma.hbm_to_vmem [thread:$0]  %s16, 256, %s18, [#allocation4], 128, 128, 8
    $region5: #{tpu_custom_call.1} parent=1 // pred_fallthru
      _
    // Predicated region
    $region6: #{tpu_custom_call.1} parent=1 // pred_check
      _
    $region7: #{tpu_custom_call.1} parent=1 // pred_check_branch
      %25 = sbr.rel (0) target = $region9
    $region8: #{tpu_custom_call.1} parent=1 // pred_region
      _
    $region9: #{tpu_custom_call.1} parent=1 // pred_fallthru
      _
    // Predicated region
    $region10: #{tpu_custom_call.1} parent=1 // pred_check
      _
    $region11: #{tpu_custom_call.1} parent=1 // pred_check_branch
      %27 = sbr.rel (0) target = $region13
    $region12: #{tpu_custom_call.1} parent=1 // pred_region
      _
    $region13: #{tpu_custom_call.1} parent=1 // pred_fallthru
      _
    // Predicated region
    $region14: #{tpu_custom_call.1} parent=1 // pred_check
      _
    $region15: #{tpu_custom_call.1} parent=1 // pred_check_branch
      %29 = sbr.rel (0) target = $region17
    $region16: #{tpu_custom_call.1} parent=1 // pred_region
      %31 = dma.done [#allocation4], 256
    $region17: #{tpu_custom_call.1} parent=1 // pred_fallthru
      _
    %s32 = sld [smem:[#allocation2]]
    %v33 = vld [vmem:[%s1] sm:$0x1]
    %v34 = vld [vmem:[#allocation3] sm:$0xff]
    %v35 = vld [vmem:[#allocation3 + $0x8] sm:$0xff]
    %v37 = vperm.slane %v33, 0
    %v39 = vmul.f32 %v34, %v37
    %v40 = vmul.f32 %v35, %v37
    %vm41 = vcmask 261120
    %v42 = vsel %vm41, %v39, 0.0
    %43 = vadd.xlane.f32.xlu0 %v42
    %v44 = vpop.xlane.xlu0 %43
    %v45 = vsel %vm41, %v40, 0.0
    %46 = vadd.xlane.f32.xlu0 %v45
    %v47 = vpop.xlane.xlu0 %46
    %v48 = vstv %s32
    %v49 = vadd.f32 %v44, %v48
    %v50 = vadd.f32 %v47, %v48
    %v51 = vrot.slane %v49, 4
    %v52 = vmax.f32 %v49, %v51
    %v53 = vrot.slane %v52, 2
    %v54 = vmax.f32 %v52, %v53
    %v55 = vrot.slane %v54, 1
    %v56 = vmax.f32 %v54, %v55
    %v57 = vrot.slane %v50, 4
    %v58 = vmax.f32 %v50, %v57
    %v59 = vrot.slane %v58, 2
    %v60 = vmax.f32 %v58, %v59
    %v61 = vrot.slane %v60, 1
    %v62 = vmax.f32 %v60, %v61
    %v63 = vsub.f32 %v49, %v56
    %v64 = vsub.f32 %v50, %v62
    %v65 = vmul.f32 %v63, 1.442695
    %v66 = vpow.pop %v65
    %v67 = vmul.f32 %v64, 1.442695
    %v68 = vpow.pop %v67
    %v69 = vrot.slane %v66, 4
    %v70 = vadd.f32 %v66, %v69
    %v71 = vrot.slane %v70, 2
    %v72 = vadd.f32 %v70, %v71
    %v73 = vrot.slane %v72, 1
    %v74 = vadd.f32 %v72, %v73
    %v75 = vrot.slane %v68, 4
    %v76 = vadd.f32 %v68, %v75
    %v77 = vrot.slane %v76, 2
    %v78 = vadd.f32 %v76, %v77
    %v79 = vrot.slane %v78, 1
    %v80 = vadd.f32 %v78, %v79
    %v81 = vmul.f32 %v34, %v66
    %v82 = vmul.f32 %v35, %v68
    %v83 = vsel %vm41, %v81, 0.0
    %v84 = vrot.slane %v83, 4
    %v85 = vadd.f32 %v83, %v84
    %v86 = vrot.slane %v85, 2
    %v87 = vadd.f32 %v85, %v86
    %v88 = vrot.slane %v87, 1
    %v89 = vadd.f32 %v87, %v88
    %v90 = vsel %vm41, %v82, 0.0
    %v91 = vrot.slane %v90, 4
    %v92 = vadd.f32 %v90, %v91
    %v93 = vrot.slane %v92, 2
    %v94 = vadd.f32 %v92, %v93
    %v95 = vrot.slane %v94, 1
    %v96 = vadd.f32 %v94, %v95
    %v97 = vrcp.pop %v74
    %v98 = vmul.f32 %v74, %v97
    %v99 = vsub.f32 1.0, %v98
    %v100 = vmul.f32 %v97, %v99
    %v101 = vadd.f32 %v97, %v100
    %vm102 = vweird.f32 %v74
    %vm103 = vweird.f32 %v97
    %vm104 = vmor %vm102, %vm103
    %v105 = vsel %vm104, %v97, %v101
    %v106 = vand.u32 2147483647, %v74
    %vm107 = vcmp.eq.f32.partialorder %v106, 8.507059e+37
    %v108 = vand.u32 %v74, 2147483648
    %v109 = vor.u32 1.1754944e-38, %v108
    %v110 = vsel %vm107, %v109, %v105
    %v111 = vmul.f32 %v89, %v110
    %v112 = vrcp.pop %v80
    %v113 = vmul.f32 %v80, %v112
    %v114 = vsub.f32 1.0, %v113
    %v115 = vmul.f32 %v112, %v114
    %v116 = vadd.f32 %v112, %v115
    %vm117 = vweird.f32 %v80
    %vm118 = vweird.f32 %v112
    %vm119 = vmor %vm117, %vm118
    %v120 = vsel %vm119, %v112, %v116
    %v121 = vand.u32 2147483647, %v80
    %vm122 = vcmp.eq.f32.partialorder %v121, 8.507059e+37
    %v123 = vand.u32 %v80, 2147483648
    %v124 = vor.u32 1.1754944e-38, %v123
    %v125 = vsel %vm122, %v124, %v120
    %v126 = vmul.f32 %v96, %v125
    %vm129 = vcmask 1041409
    %v130 = vsel %vm129, %v126, %v111
    %vm132 = vcmask 254976
    %133 = vst.msk [vmem:[#allocation6] sm:$0x3] %vm132, %v130
    // Predicated region
    $region18: #{tpu_custom_call.1} parent=1 // pred_check
      _
    $region19: #{tpu_custom_call.1} parent=1 // pred_check_branch
      %135 = sbr.rel (0) target = $region21
    $region20: #{tpu_custom_call.1} parent=1 // pred_region
      %137 = vsyncadd [#allocation5], 0
      %s139 = sshll.u32 [#allocation6], 4
      %s140 = int_to_ptr.vmem [resolvable:$true] %s139
      %s141 = sshll.u32 %s3, 4
      %s142 = int_to_ptr.hbm [resolvable:$true] %s141
      %144 = dma.vmem_to_hbm [thread:$0]  %s140, 32, %s142, [#allocation5]
    $region21: #{tpu_custom_call.1} parent=1 // pred_fallthru
      _
    // Predicated region
    $region22: #{tpu_custom_call.1} parent=1 // pred_check
      _
    $region23: #{tpu_custom_call.1} parent=1 // pred_check_branch
      %146 = sbr.rel (0) target = $region25
    $region24: #{tpu_custom_call.1} parent=1 // pred_region
      %148 = dma.done [#allocation5], 32
    $region25: #{tpu_custom_call.1} parent=1 // pred_fallthru
      _
    %149 = vsyncpa [#allocation4], 1
    %150 = vsyncpa [#allocation5], 1

</llo_original>
